<compile_context>
chip_gen: v6e
topology: v6e:2x2x1
jax: 0.10.0
libtpu: 0.0.40
codegen_flags: <defaults>
</compile_context>

<pallas_src>
import jax
import jax.numpy as jnp
from jax.experimental import pallas as pl
from jax.experimental.pallas import tpu as pltpu

WINDOW = 4
OUTPUT_DIM = 1


def _dlinear_kernel(w_ref, b_ref, x_ref, o_ref):
    """Affine map y[j, :] = sum_k w[j, k] * x[k, :] + b[j] on the VPU.

    w_ref: SMEM (OUT, IN) f32  -- read as scalars
    b_ref: SMEM (OUT,)    f32  -- read as scalars
    x_ref: VMEM (IN, TB)  f32  -- batch along lanes
    o_ref: VMEM (OUT, TB) f32  -- lane-dense output
    """
    out_dim, in_dim = w_ref.shape
    for j in range(out_dim):            # OUT = 1: fully unrolled, static
        acc = x_ref[0:1, :] * w_ref[j, 0]
        for k in range(1, in_dim):      # IN = 4: 3 more FMAs per batch vreg
            acc = acc + x_ref[k:k + 1, :] * w_ref[j, k]
        o_ref[j:j + 1, :] = (acc + b_ref[j]).astype(o_ref.dtype)


def dlinear_forward(x, weight, bias, *, block_b=2048):
    """x: (B, IN) f32; weight: (OUT, IN); bias: (OUT,). Returns (B, OUT) f32.

    Matches torch.nn.Linear: y = x @ weight.T + bias.
    """
    B, IN = x.shape
    OUT, _ = weight.shape

    # Batch tile on the lane axis: multiple of 128, capped by block_b.
    tb = min(block_b, ((B + 127) // 128) * 128)
    b_pad = ((B + tb - 1) // tb) * tb

    # Layout plumbing (not compute hoisting): batch-in-lanes + zero padding.
    x_t = jnp.pad(x.T.astype(jnp.float32), ((0, 0), (0, b_pad - B)))

    y_t = pl.pallas_call(
        _dlinear_kernel,
        out_shape=jax.ShapeDtypeStruct((OUT, b_pad), jnp.float32),
        grid=(b_pad // tb,),
        in_specs=[
            pl.BlockSpec(memory_space=pltpu.MemorySpace.SMEM),   # weight scalars
            pl.BlockSpec(memory_space=pltpu.MemorySpace.SMEM),   # bias scalars
            pl.BlockSpec((IN, tb), lambda i: (0, i)),            # x, batch in lanes
        ],
        out_specs=pl.BlockSpec((OUT, tb), lambda i: (0, i)),     # lane-dense out
        compiler_params=pltpu.CompilerParams(
            dimension_semantics=("parallel",)),
    )(weight.astype(jnp.float32), bias.astype(jnp.float32), x_t)

    return y_t[:, :B].T                                          # (B, OUT)


# jit the wrapper so the pad/transpose layout plumbing fuses with the
# pallas_call launch instead of being separate dispatches.
dlinear = jax.jit(dlinear_forward, static_argnames=("block_b",))


if __name__ == "__main__":
    key = jax.random.PRNGKey(0)
    k_x, k_w, k_b, k_x2 = jax.random.split(key, 4)

    # Deterministic param init mimicking torch.nn.Linear (uniform +/- 1/sqrt(in)).
    bound = 1.0 / (WINDOW ** 0.5)
    weight = jax.random.uniform(k_w, (OUTPUT_DIM, WINDOW), jnp.float32,
                                minval=-bound, maxval=bound)
    bias = jax.random.uniform(k_b, (OUTPUT_DIM,), jnp.float32,
                              minval=-bound, maxval=bound)

    # Small batch consistent with the module (sliding-window regression).
    B = 8
    x = jax.random.normal(k_x, (B, WINDOW), jnp.float32)
    out = jax.block_until_ready(dlinear(x, weight, bias))
    ref = x @ weight.T + bias
    assert out.shape == (B, OUTPUT_DIM)
    assert jnp.allclose(out, ref, atol=1e-5, rtol=1e-5)

    # Second check: batch not a multiple of the tile + multi-step grid,
    # exercising padding, pipelining and the "parallel" batch axis.
    B2 = 300
    x2 = jax.random.normal(k_x2, (B2, WINDOW), jnp.float32)
    out2 = jax.block_until_ready(dlinear(x2, weight, bias, block_b=128))
    ref2 = x2 @ weight.T + bias
    assert out2.shape == (B2, OUTPUT_DIM)
    assert jnp.allclose(out2, ref2, atol=1e-5, rtol=1e-5)

    print("KERNEL_OK")
</pallas_src>

<mosaic_0001>
module attributes {stable_mosaic.version = 11 : i64} {
  func.func @_dlinear_kernel(%arg0: i32, %arg1: memref<1x4xf32, #tpu.memory_space<smem>>, %arg2: memref<1xf32, #tpu.memory_space<smem>>, %arg3: memref<4x128xf32, #tpu.memory_space<vmem>>, %arg4: memref<1x128xf32, #tpu.memory_space<vmem>>) attributes {dimension_semantics = [#tpu.dimension_semantics<parallel>], iteration_bounds = array<i64: 1>, scalar_prefetch = 0 : i64, scratch_operands = 0 : i64, tpu.core_type = #tpu.core_type<tc>, window_params = [{transform_indices = @transform_0, window_bounds = array<i64: 1, 4>}, {transform_indices = @transform_1, window_bounds = array<i64: 1>}, {transform_indices = @transform_2, window_bounds = array<i64: 4, 128>}, {transform_indices = @transform_3, window_bounds = array<i64: 1, 128>}]} {
    %c0 = arith.constant 0 : index
    %c0_0 = arith.constant 0 : index
    %0 = vector.load %arg3[%c0, %c0_0] : memref<4x128xf32, #tpu.memory_space<vmem>>, vector<1x128xf32>
    %c0_1 = arith.constant 0 : index
    %c0_2 = arith.constant 0 : index
    %1 = memref.load %arg1[%c0_1, %c0_2] : memref<1x4xf32, #tpu.memory_space<smem>>
    %2 = vector.broadcast %1 : f32 to vector<1x128xf32>
    %3 = arith.mulf %0, %2 : vector<1x128xf32>
    %c1 = arith.constant 1 : index
    %c0_3 = arith.constant 0 : index
    %4 = vector.load %arg3[%c1, %c0_3] : memref<4x128xf32, #tpu.memory_space<vmem>>, vector<1x128xf32>
    %c0_4 = arith.constant 0 : index
    %c1_5 = arith.constant 1 : index
    %5 = memref.load %arg1[%c0_4, %c1_5] : memref<1x4xf32, #tpu.memory_space<smem>>
    %6 = vector.broadcast %5 : f32 to vector<1x128xf32>
    %7 = arith.mulf %4, %6 : vector<1x128xf32>
    %8 = arith.addf %3, %7 : vector<1x128xf32>
    %c2 = arith.constant 2 : index
    %c0_6 = arith.constant 0 : index
    %9 = vector.load %arg3[%c2, %c0_6] : memref<4x128xf32, #tpu.memory_space<vmem>>, vector<1x128xf32>
    %c0_7 = arith.constant 0 : index
    %c2_8 = arith.constant 2 : index
    %10 = memref.load %arg1[%c0_7, %c2_8] : memref<1x4xf32, #tpu.memory_space<smem>>
    %11 = vector.broadcast %10 : f32 to vector<1x128xf32>
    %12 = arith.mulf %9, %11 : vector<1x128xf32>
    %13 = arith.addf %8, %12 : vector<1x128xf32>
    %c3 = arith.constant 3 : index
    %c0_9 = arith.constant 0 : index
    %14 = vector.load %arg3[%c3, %c0_9] : memref<4x128xf32, #tpu.memory_space<vmem>>, vector<1x128xf32>
    %c0_10 = arith.constant 0 : index
    %c3_11 = arith.constant 3 : index
    %15 = memref.load %arg1[%c0_10, %c3_11] : memref<1x4xf32, #tpu.memory_space<smem>>
    %16 = vector.broadcast %15 : f32 to vector<1x128xf32>
    %17 = arith.mulf %14, %16 : vector<1x128xf32>
    %18 = arith.addf %13, %17 : vector<1x128xf32>
    %c0_12 = arith.constant 0 : index
    %19 = memref.load %arg2[%c0_12] : memref<1xf32, #tpu.memory_space<smem>>
    %20 = vector.broadcast %19 : f32 to vector<1x128xf32>
    %21 = arith.addf %18, %20 : vector<1x128xf32>
    %c0_13 = arith.constant 0 : index
    %c0_14 = arith.constant 0 : index
    %22 = vector.load %arg4[%c0_13, %c0_14] : memref<1x128xf32, #tpu.memory_space<vmem>>, vector<1x128xf32>
    tpu.vector_store %arg4[%c0_13, %c0_14], %21 {strides = array<i32>} : memref<1x128xf32, #tpu.memory_space<vmem>>, vector<1x128xf32>,
    return
  }
  func.func @transform_0(%arg0: i32) -> (i32, i32) {
    %c0_i32 = arith.constant 0 : i32
    %c0_i32_0 = arith.constant 0 : i32
    %c0_i32_1 = arith.constant 0 : i32
    return %c0_i32, %c0_i32_0 : i32, i32
  }
  func.func @transform_1(%arg0: i32) -> i32 {
    %c0_i32 = arith.constant 0 : i32
    %c0_i32_0 = arith.constant 0 : i32
    return %c0_i32 : i32
  }
  func.func @transform_2(%arg0: i32) -> (i32, i32) {
    %c0_i32 = arith.constant 0 : i32
    %c0_i32_0 = arith.constant 0 : i32
    return %c0_i32, %arg0 : i32, i32
  }
  func.func @transform_3(%arg0: i32) -> (i32, i32) {
    %c0_i32 = arith.constant 0 : i32
    %c0_i32_0 = arith.constant 0 : i32
    return %c0_i32, %arg0 : i32, i32
  }
}

</mosaic_0001>

<llo_original>
// kernel: dlinear_forward.1
$region0: #{dlinear_forward.1}
  #allocation0 [shape = 'u32[]', space=smem, size = 0x4, offset = 0x4, fixed_abs, tag = 'smem constant byte address 0x4 - core index']
  #allocation1 [shape = 'u32[144,128]{1,0:T(1,128)}', space=vmem, size = 0x12000, scoped, tag = 'internal scratch']
  #allocation2 [shape = 'f32[1]{0:T(128)S(6)}', space=smem, size = 0x200, scoped, tag = 'scoped memory for dlinear_forward.1']
  %s0 = inlined_call_operand.vmem [shape: f32[1,4], index: 0, kind: input, shape index: {}]
  %s1 = inlined_call_operand.<no memory space> [shape: f32[1], index: 1, kind: input, shape index: {}]
  %s2 = inlined_call_operand.vmem [shape: f32[4,128], index: 2, kind: input, shape index: {}]
  %s3 = inlined_call_operand.vmem [shape: f32[1,128], index: 3, kind: output, shape index: {}]
  %s4 = sld [smem:[#allocation0]]
  $region26: #{dlinear_forward.1} parent=0
    _
  %s6 = ssub.s32 1, %s4
  %s7 = scalar_select 0, %s6, %s4
  %8 = sst [smem:[#allocation2]] %s1
  $region1: #{dlinear_forward.1} parent=0
    #allocation3 [shape = 'u8[512]{0}', space=smem, size = 0x200, scoped, tag = 'input window, operand 0, single buffered']
    #allocation4 [shape = 's32[1]{0}', space=sflag, size = 0x4, scoped, tag = 'scoped memory for dlinear_forward.1']
    %9 = vsyncpa [#allocation4], 0
    // Predicated region
    $region2: #{dlinear_forward.1} parent=1 // pred_check
      _
    $region3: #{dlinear_forward.1} parent=1 // pred_check_branch
      %11 = sbr.rel (0) target = $region5
    $region4: #{dlinear_forward.1} parent=1 // pred_region
      %s13 = ssub.s32 16, 16
      %14 = vsyncadd [#allocation4], %s13
      %s16 = sshll.u32 %s0, 4
      %s17 = int_to_ptr.vmem [resolvable:$true] %s16
      %19 = dma.vmem_to_smem %s17, 16, [#allocation3], [#allocation4]
    $region5: #{dlinear_forward.1} parent=1 // pred_fallthru
      _
    // Predicated region
    $region6: #{dlinear_forward.1} parent=1 // pred_check
      _
    $region7: #{dlinear_forward.1} parent=1 // pred_check_branch
      %21 = sbr.rel (0) target = $region9
    $region8: #{dlinear_forward.1} parent=1 // pred_region
      _
    $region9: #{dlinear_forward.1} parent=1 // pred_fallthru
      _
    // Predicated region
    $region10: #{dlinear_forward.1} parent=1 // pred_check
      _
    $region11: #{dlinear_forward.1} parent=1 // pred_check_branch
      %23 = sbr.rel (0) target = $region13
    $region12: #{dlinear_forward.1} parent=1 // pred_region
      _
    $region13: #{dlinear_forward.1} parent=1 // pred_fallthru
      _
    // Predicated region
    $region14: #{dlinear_forward.1} parent=1 // pred_check
      _
    $region15: #{dlinear_forward.1} parent=1 // pred_check_branch
      %25 = sbr.rel (0) target = $region17
    $region16: #{dlinear_forward.1} parent=1 // pred_region
      %26 = dma.done [#allocation4], 16
    $region17: #{dlinear_forward.1} parent=1 // pred_fallthru
      _
    %27 = sfence
    %v28 = vld [vmem:[%s2] sm:$0x1]
    %s29 = sld [smem:[#allocation3]]
    %v30 = vstv %s29
    %v31 = vmul.f32 %v28, %v30
    %v32 = vld [vmem:[%s2 + $0x1] sm:$0x1]
    %s33 = sld [smem:[#allocation3 + $0x1]]
    %v34 = vstv %s33
    %v35 = vmul.f32 %v32, %v34
    %v36 = vadd.f32 %v31, %v35
    %v37 = vld [vmem:[%s2 + $0x2] sm:$0x1]
    %s38 = sld [smem:[#allocation3 + $0x2]]
    %v39 = vstv %s38
    %v40 = vmul.f32 %v37, %v39
    %v41 = vadd.f32 %v36, %v40
    %v42 = vld [vmem:[%s2 + $0x3] sm:$0x1]
    %s43 = sld [smem:[#allocation3 + $0x3]]
    %v44 = vstv %s43
    %v45 = vmul.f32 %v42, %v44
    %v46 = vadd.f32 %v41, %v45
    %s47 = sld [smem:[#allocation2]]
    %v48 = vstv %s47
    %v49 = vadd.f32 %v46, %v48
    %50 = vst [vmem:[%s3] sm:$0x1] %v49
    // Predicated region
    $region18: #{dlinear_forward.1} parent=1 // pred_check
      _
    $region19: #{dlinear_forward.1} parent=1 // pred_check_branch
      %52 = sbr.rel (0) target = $region21
    $region20: #{dlinear_forward.1} parent=1 // pred_region
      _
    $region21: #{dlinear_forward.1} parent=1 // pred_fallthru
      _
    // Predicated region
    $region22: #{dlinear_forward.1} parent=1 // pred_check
      _
    $region23: #{dlinear_forward.1} parent=1 // pred_check_branch
      %54 = sbr.rel (0) target = $region25
    $region24: #{dlinear_forward.1} parent=1 // pred_region
      _
    $region25: #{dlinear_forward.1} parent=1 // pred_fallthru
      _
    %55 = vsyncpa [#allocation4], 1

</llo_original>
